<compile_context>
chip_gen: v7x
topology: tpu7x:2x2x1
jax: 0.10.0
libtpu: 0.0.40
codegen_flags: <defaults>
</compile_context>

<pallas_src>
import jax
import jax.numpy as jnp
from jax.experimental import pallas as pl
from jax.experimental.pallas import tpu as pltpu


def _mlp_kernel(xf_ref, xc_ref,
                w1f_ref, w1c_ref, b1_ref,
                w2_ref, b2_ref,
                w3_ref, b3_ref,
                w4_ref, b4_ref,
                out_ref):
    bf16 = jnp.bfloat16
    # Activation tiles arrive f32; cast to bf16 for the MXU.
    xf = xf_ref[...].astype(bf16)          # (tm, F)
    xc = xc_ref[...].astype(bf16)          # (tm, 2)

    # Layer 1 — fused concat: [xf, xc] @ W1 == xf @ W1[:F] + xc @ W1[F:]
    h = jnp.dot(xf, w1f_ref[...], preferred_element_type=jnp.float32)
    h = h + jnp.dot(xc, w1c_ref[...], preferred_element_type=jnp.float32)
    h = jnp.maximum(h + b1_ref[...], 0.0)                       # f32 bias/ReLU

    # Layer 2 + ReLU
    h = jnp.dot(h.astype(bf16), w2_ref[...],
                preferred_element_type=jnp.float32) + b2_ref[...]
    h = jnp.maximum(h, 0.0)

    # Layer 3 + ReLU
    h = jnp.dot(h.astype(bf16), w3_ref[...],
                preferred_element_type=jnp.float32) + b3_ref[...]
    h = jnp.maximum(h, 0.0)

    # Final layer (no activation), output padded to 128 lanes
    y = jnp.dot(h.astype(bf16), w4_ref[...],
                preferred_element_type=jnp.float32) + b4_ref[...]
    out_ref[...] = y.astype(out_ref.dtype)


def parametric_point_decoder(image_features, coords_2d, params, *, tm=512):
    """Pallas implementation of ParametricPointDecoder.forward.

    image_features: (B, N, F) float32
    coords_2d:      (B, N, 2) float32
    params: dict with w1..w4 stored (in, out) and b1..b4 (1, out), float32
    returns: (B, N, output_size) float32
    """
    B, N, F = image_features.shape
    M = B * N
    out_dim = params["w4"].shape[1]
    OUT_PAD = 128  # lane-dense output slab (multiple of 128)

    # Clamp the row tile to the (8-aligned) problem size, then pad rows up to
    # a tile multiple so any M works (padded rows are sliced off afterwards).
    tm = int(max(8, min(tm, ((M + 7) // 8) * 8)))
    M_pad = ((M + tm - 1) // tm) * tm

    xf = image_features.reshape(M, F)
    xc = coords_2d.reshape(M, 2)
    if M_pad != M:
        xf = jnp.pad(xf, ((0, M_pad - M), (0, 0)))
        xc = jnp.pad(xc, ((0, M_pad - M), (0, 0)))

    bf16 = jnp.bfloat16
    w1 = params["w1"]
    w1f = w1[:F, :].astype(bf16)                  # (F, H1)
    w1c = w1[F:, :].astype(bf16)                  # (2, H1)
    b1 = params["b1"].astype(jnp.float32)
    w2 = params["w2"].astype(bf16)
    b2 = params["b2"].astype(jnp.float32)
    w3 = params["w3"].astype(bf16)
    b3 = params["b3"].astype(jnp.float32)
    H1, H2, H3 = w1.shape[1], w3.shape[0], params["w4"].shape[0]
    # Pad final layer to 128 output lanes (zero columns are exact).
    w4 = jnp.pad(params["w4"], ((0, 0), (0, OUT_PAD - out_dim))).astype(bf16)
    b4 = jnp.pad(params["b4"], ((0, 0), (0, OUT_PAD - out_dim))).astype(jnp.float32)

    def row_spec(cols):
        return pl.BlockSpec((tm, cols), lambda i: (i, 0))

    def full_spec(arr):
        # whole array resident in VMEM, same block every grid step
        return pl.BlockSpec(arr.shape, lambda i: (0, 0))

    flops = 2 * M_pad * (F * H1 + 2 * H1 + H1 * H2 + H2 * H3 + H3 * OUT_PAD)
    bytes_accessed = int(
        (xf.size + xc.size) * 4
        + sum(a.size * a.dtype.itemsize
              for a in (w1f, w1c, b1, w2, b2, w3, b3, w4, b4))
        + M_pad * OUT_PAD * 4)

    out = pl.pallas_call(
        _mlp_kernel,
        out_shape=jax.ShapeDtypeStruct((M_pad, OUT_PAD), jnp.float32),
        grid_spec=pltpu.PrefetchScalarGridSpec(
            num_scalar_prefetch=0,
            grid=(M_pad // tm,),
            in_specs=[
                row_spec(F),                       # image feature tile
                row_spec(2),                       # coord tile
                full_spec(w1f), full_spec(w1c), full_spec(b1),
                full_spec(w2), full_spec(b2),
                full_spec(w3), full_spec(b3),
                full_spec(w4), full_spec(b4),
            ],
            out_specs=pl.BlockSpec((tm, OUT_PAD), lambda i: (i, 0)),
        ),
        compiler_params=pltpu.CompilerParams(
            dimension_semantics=("parallel",),     # row axis shards across TCs (v7x)
            vmem_limit_bytes=32 * 1024 * 1024,     # safe on v5e/v6e/v7x
        ),
        cost_estimate=pl.CostEstimate(
            flops=flops, transcendentals=0, bytes_accessed=bytes_accessed),
    )(xf, xc, w1f, w1c, b1, w2, b2, w3, b3, w4, b4)

    return out[:M, :out_dim].reshape(B, N, out_dim)


def init_params(key, feature_size, hidden_sizes=(512, 256, 128), output_size=3):
    """Deterministic synthetic weights. Stored as (in, out) so kernel does x @ W."""
    dims = [feature_size + 2, *hidden_sizes, output_size]
    params = {}
    keys = jax.random.split(key, len(dims) - 1)
    for li, (din, dout) in enumerate(zip(dims[:-1], dims[1:]), start=1):
        kw, kb = jax.random.split(keys[li - 1])
        scale = 1.0 / jnp.sqrt(din)
        params[f"w{li}"] = (jax.random.uniform(kw, (din, dout), jnp.float32,
                                               -1.0, 1.0) * scale)
        params[f"b{li}"] = (jax.random.uniform(kb, (1, dout), jnp.float32,
                                               -1.0, 1.0) * scale)
    return params


def _reference(image_features, coords_2d, params):
    """Reference that mirrors the kernel's bf16-MXU / f32-accumulate numerics."""
    bf16 = jnp.bfloat16
    x = jnp.concatenate([image_features, coords_2d], axis=-1).astype(bf16)
    h = jnp.maximum(jnp.dot(x, params["w1"].astype(bf16),
                            preferred_element_type=jnp.float32) + params["b1"], 0.0)
    h = jnp.maximum(jnp.dot(h.astype(bf16), params["w2"].astype(bf16),
                            preferred_element_type=jnp.float32) + params["b2"], 0.0)
    h = jnp.maximum(jnp.dot(h.astype(bf16), params["w3"].astype(bf16),
                            preferred_element_type=jnp.float32) + params["b3"], 0.0)
    return jnp.dot(h.astype(bf16), params["w4"].astype(bf16),
                   preferred_element_type=jnp.float32) + params["b4"]


if __name__ == "__main__":
    key = jax.random.PRNGKey(0)
    k_feat, k_coord, k_param = jax.random.split(key, 3)

    B, N, FEATURE_SIZE = 2, 8, 32  # small shapes; M = B*N = 16 points
    image_features = jax.random.normal(k_feat, (B, N, FEATURE_SIZE), jnp.float32)
    coords_2d = jax.random.uniform(k_coord, (B, N, 2), jnp.float32)

    params = init_params(k_param, FEATURE_SIZE)

    coords_3d = parametric_point_decoder(image_features, coords_2d, params)
    coords_3d = jax.block_until_ready(coords_3d)

    ref = _reference(image_features, coords_2d, params)
    assert coords_3d.shape == (B, N, 3)
    assert jnp.allclose(coords_3d, ref, atol=1e-2, rtol=1e-2)

    print("KERNEL_OK")
</pallas_src>

<mosaic_0001>
module attributes {stable_mosaic.version = 11 : i64} {
  func.func @_mlp_kernel(%arg0: i32, %arg1: memref<16x32xf32, #tpu.memory_space<vmem>>, %arg2: memref<16x2xf32, #tpu.memory_space<vmem>>, %arg3: memref<32x512xbf16, #tpu.memory_space<vmem>>, %arg4: memref<2x512xbf16, #tpu.memory_space<vmem>>, %arg5: memref<1x512xf32, #tpu.memory_space<vmem>>, %arg6: memref<512x256xbf16, #tpu.memory_space<vmem>>, %arg7: memref<1x256xf32, #tpu.memory_space<vmem>>, %arg8: memref<256x128xbf16, #tpu.memory_space<vmem>>, %arg9: memref<1x128xf32, #tpu.memory_space<vmem>>, %arg10: memref<128x128xbf16, #tpu.memory_space<vmem>>, %arg11: memref<1x128xf32, #tpu.memory_space<vmem>>, %arg12: memref<16x128xf32, #tpu.memory_space<vmem>>) attributes {dimension_semantics = [#tpu.dimension_semantics<parallel>], iteration_bounds = array<i64: 1>, scalar_prefetch = 0 : i64, scratch_operands = 0 : i64, tpu.core_type = #tpu.core_type<tc>, window_params = [{transform_indices = @transform_0, window_bounds = array<i64: 16, 32>}, {transform_indices = @transform_1, window_bounds = array<i64: 16, 2>}, {pipeline_mode = #tpu.pipeline_mode<synchronous>, transform_indices = @transform_2, window_bounds = array<i64: 32, 512>}, {pipeline_mode = #tpu.pipeline_mode<synchronous>, transform_indices = @transform_3, window_bounds = array<i64: 2, 512>}, {pipeline_mode = #tpu.pipeline_mode<synchronous>, transform_indices = @transform_4, window_bounds = array<i64: 1, 512>}, {pipeline_mode = #tpu.pipeline_mode<synchronous>, transform_indices = @transform_5, window_bounds = array<i64: 512, 256>}, {pipeline_mode = #tpu.pipeline_mode<synchronous>, transform_indices = @transform_6, window_bounds = array<i64: 1, 256>}, {pipeline_mode = #tpu.pipeline_mode<synchronous>, transform_indices = @transform_7, window_bounds = array<i64: 256, 128>}, {pipeline_mode = #tpu.pipeline_mode<synchronous>, transform_indices = @transform_8, window_bounds = array<i64: 1, 128>}, {pipeline_mode = #tpu.pipeline_mode<synchronous>, transform_indices = @transform_9, window_bounds = array<i64: 128, 128>}, {pipeline_mode = #tpu.pipeline_mode<synchronous>, transform_indices = @transform_10, window_bounds = array<i64: 1, 128>}, {transform_indices = @transform_11, window_bounds = array<i64: 16, 128>}]} {
    %c0 = arith.constant 0 : index
    %c0_0 = arith.constant 0 : index
    %0 = vector.load %arg1[%c0, %c0_0] : memref<16x32xf32, #tpu.memory_space<vmem>>, vector<16x32xf32>
    %1 = arith.truncf %0 : vector<16x32xf32> to vector<16x32xbf16>
    %c0_1 = arith.constant 0 : index
    %c0_2 = arith.constant 0 : index
    %2 = vector.load %arg2[%c0_1, %c0_2] : memref<16x2xf32, #tpu.memory_space<vmem>>, vector<16x2xf32>
    %3 = arith.truncf %2 : vector<16x2xf32> to vector<16x2xbf16>
    %c0_3 = arith.constant 0 : index
    %c0_4 = arith.constant 0 : index
    %4 = vector.load %arg3[%c0_3, %c0_4] : memref<32x512xbf16, #tpu.memory_space<vmem>>, vector<32x512xbf16>
    %cst = arith.constant dense<0.000000e+00> : vector<16x512xf32>
    %5 = tpu.matmul %1, %4, %cst {dimension_numbers = #tpu.dot_dimension_numbers<[1], [0], [0], [1], [0, 0, 1, 1], [], []>} : vector<16x32xbf16>, vector<32x512xbf16>, vector<16x512xf32> -> vector<16x512xf32>
    %c0_5 = arith.constant 0 : index
    %c0_6 = arith.constant 0 : index
    %6 = vector.load %arg4[%c0_5, %c0_6] : memref<2x512xbf16, #tpu.memory_space<vmem>>, vector<2x512xbf16>
    %cst_7 = arith.constant dense<0.000000e+00> : vector<16x512xf32>
    %7 = tpu.matmul %3, %6, %cst_7 {dimension_numbers = #tpu.dot_dimension_numbers<[1], [0], [0], [1], [0, 0, 1, 1], [], []>} : vector<16x2xbf16>, vector<2x512xbf16>, vector<16x512xf32> -> vector<16x512xf32>
    %8 = arith.addf %5, %7 : vector<16x512xf32>
    %c0_8 = arith.constant 0 : index
    %c0_9 = arith.constant 0 : index
    %9 = vector.load %arg5[%c0_8, %c0_9] : memref<1x512xf32, #tpu.memory_space<vmem>>, vector<1x512xf32>
    %10 = vector.broadcast %9 : vector<1x512xf32> to vector<16x512xf32>
    %11 = arith.addf %8, %10 : vector<16x512xf32>
    %cst_10 = arith.constant 0.000000e+00 : f32
    %12 = vector.broadcast %cst_10 : f32 to vector<16x512xf32>
    %13 = arith.maximumf %11, %12 : vector<16x512xf32>
    %14 = arith.truncf %13 : vector<16x512xf32> to vector<16x512xbf16>
    %c0_11 = arith.constant 0 : index
    %c0_12 = arith.constant 0 : index
    %15 = vector.load %arg6[%c0_11, %c0_12] : memref<512x256xbf16, #tpu.memory_space<vmem>>, vector<512x256xbf16>
    %cst_13 = arith.constant dense<0.000000e+00> : vector<16x256xf32>
    %16 = tpu.matmul %14, %15, %cst_13 {dimension_numbers = #tpu.dot_dimension_numbers<[1], [0], [0], [1], [0, 0, 1, 1], [], []>} : vector<16x512xbf16>, vector<512x256xbf16>, vector<16x256xf32> -> vector<16x256xf32>
    %c0_14 = arith.constant 0 : index
    %c0_15 = arith.constant 0 : index
    %17 = vector.load %arg7[%c0_14, %c0_15] : memref<1x256xf32, #tpu.memory_space<vmem>>, vector<1x256xf32>
    %18 = vector.broadcast %17 : vector<1x256xf32> to vector<16x256xf32>
    %19 = arith.addf %16, %18 : vector<16x256xf32>
    %cst_16 = arith.constant 0.000000e+00 : f32
    %20 = vector.broadcast %cst_16 : f32 to vector<16x256xf32>
    %21 = arith.maximumf %19, %20 : vector<16x256xf32>
    %22 = arith.truncf %21 : vector<16x256xf32> to vector<16x256xbf16>
    %c0_17 = arith.constant 0 : index
    %c0_18 = arith.constant 0 : index
    %23 = vector.load %arg8[%c0_17, %c0_18] : memref<256x128xbf16, #tpu.memory_space<vmem>>, vector<256x128xbf16>
    %cst_19 = arith.constant dense<0.000000e+00> : vector<16x128xf32>
    %24 = tpu.matmul %22, %23, %cst_19 {dimension_numbers = #tpu.dot_dimension_numbers<[1], [0], [0], [1], [0, 0, 1, 1], [], []>} : vector<16x256xbf16>, vector<256x128xbf16>, vector<16x128xf32> -> vector<16x128xf32>
    %c0_20 = arith.constant 0 : index
    %c0_21 = arith.constant 0 : index
    %25 = vector.load %arg9[%c0_20, %c0_21] : memref<1x128xf32, #tpu.memory_space<vmem>>, vector<1x128xf32>
    %26 = vector.broadcast %25 : vector<1x128xf32> to vector<16x128xf32>
    %27 = arith.addf %24, %26 : vector<16x128xf32>
    %cst_22 = arith.constant 0.000000e+00 : f32
    %28 = vector.broadcast %cst_22 : f32 to vector<16x128xf32>
    %29 = arith.maximumf %27, %28 : vector<16x128xf32>
    %30 = arith.truncf %29 : vector<16x128xf32> to vector<16x128xbf16>
    %c0_23 = arith.constant 0 : index
    %c0_24 = arith.constant 0 : index
    %31 = vector.load %arg10[%c0_23, %c0_24] : memref<128x128xbf16, #tpu.memory_space<vmem>>, vector<128x128xbf16>
    %cst_25 = arith.constant dense<0.000000e+00> : vector<16x128xf32>
    %32 = tpu.matmul %30, %31, %cst_25 {dimension_numbers = #tpu.dot_dimension_numbers<[1], [0], [0], [1], [0, 0, 1, 1], [], []>} : vector<16x128xbf16>, vector<128x128xbf16>, vector<16x128xf32> -> vector<16x128xf32>
    %c0_26 = arith.constant 0 : index
    %c0_27 = arith.constant 0 : index
    %33 = vector.load %arg11[%c0_26, %c0_27] : memref<1x128xf32, #tpu.memory_space<vmem>>, vector<1x128xf32>
    %34 = vector.broadcast %33 : vector<1x128xf32> to vector<16x128xf32>
    %35 = arith.addf %32, %34 : vector<16x128xf32>
    %c0_28 = arith.constant 0 : index
    %c0_29 = arith.constant 0 : index
    %36 = vector.load %arg12[%c0_28, %c0_29] : memref<16x128xf32, #tpu.memory_space<vmem>>, vector<16x128xf32>
    tpu.vector_store %arg12[%c0_28, %c0_29], %35 {strides = array<i32>} : memref<16x128xf32, #tpu.memory_space<vmem>>, vector<16x128xf32>,
    return
  }
  func.func @transform_0(%arg0: i32) -> (i32, i32) {
    %c0_i32 = arith.constant 0 : i32
    %c0_i32_0 = arith.constant 0 : i32
    return %arg0, %c0_i32 : i32, i32
  }
  func.func @transform_1(%arg0: i32) -> (i32, i32) {
    %c0_i32 = arith.constant 0 : i32
    %c0_i32_0 = arith.constant 0 : i32
    return %arg0, %c0_i32 : i32, i32
  }
  func.func @transform_2(%arg0: i32) -> (i32, i32) {
    %c0_i32 = arith.constant 0 : i32
    %c0_i32_0 = arith.constant 0 : i32
    %c0_i32_1 = arith.constant 0 : i32
    return %c0_i32, %c0_i32_0 : i32, i32
  }
  func.func @transform_3(%arg0: i32) -> (i32, i32) {
    %c0_i32 = arith.constant 0 : i32
    %c0_i32_0 = arith.constant 0 : i32
    %c0_i32_1 = arith.constant 0 : i32
    return %c0_i32, %c0_i32_0 : i32, i32
  }
  func.func @transform_4(%arg0: i32) -> (i32, i32) {
    %c0_i32 = arith.constant 0 : i32
    %c0_i32_0 = arith.constant 0 : i32
    %c0_i32_1 = arith.constant 0 : i32
    return %c0_i32, %c0_i32_0 : i32, i32
  }
  func.func @transform_5(%arg0: i32) -> (i32, i32) {
    %c0_i32 = arith.constant 0 : i32
    %c0_i32_0 = arith.constant 0 : i32
    %c0_i32_1 = arith.constant 0 : i32
    return %c0_i32, %c0_i32_0 : i32, i32
  }
  func.func @transform_6(%arg0: i32) -> (i32, i32) {
    %c0_i32 = arith.constant 0 : i32
    %c0_i32_0 = arith.constant 0 : i32
    %c0_i32_1 = arith.constant 0 : i32
    return %c0_i32, %c0_i32_0 : i32, i32
  }
  func.func @transform_7(%arg0: i32) -> (i32, i32) {
    %c0_i32 = arith.constant 0 : i32
    %c0_i32_0 = arith.constant 0 : i32
    %c0_i32_1 = arith.constant 0 : i32
    return %c0_i32, %c0_i32_0 : i32, i32
  }
  func.func @transform_8(%arg0: i32) -> (i32, i32) {
    %c0_i32 = arith.constant 0 : i32
    %c0_i32_0 = arith.constant 0 : i32
    %c0_i32_1 = arith.constant 0 : i32
    return %c0_i32, %c0_i32_0 : i32, i32
  }
  func.func @transform_9(%arg0: i32) -> (i32, i32) {
    %c0_i32 = arith.constant 0 : i32
    %c0_i32_0 = arith.constant 0 : i32
    %c0_i32_1 = arith.constant 0 : i32
    return %c0_i32, %c0_i32_0 : i32, i32
  }
  func.func @transform_10(%arg0: i32) -> (i32, i32) {
    %c0_i32 = arith.constant 0 : i32
    %c0_i32_0 = arith.constant 0 : i32
    %c0_i32_1 = arith.constant 0 : i32
    return %c0_i32, %c0_i32_0 : i32, i32
  }
  func.func @transform_11(%arg0: i32) -> (i32, i32) {
    %c0_i32 = arith.constant 0 : i32
    %c0_i32_0 = arith.constant 0 : i32
    return %arg0, %c0_i32 : i32, i32
  }
}

</mosaic_0001>

<llo_original>
// kernel: tpu_custom_call.1
$region0: #{tpu_custom_call.1}
  #allocation0 [shape = 'u32[]', space=smem, size = 0x4, offset = 0x4, fixed_abs, tag = 'smem constant byte address 0x4 - core index']
  #allocation1 [shape = 'u32[144,128]{1,0:T(1,128)}', space=vmem, size = 0x12000, scoped, tag = 'internal scratch']
  %s0 = inlined_call_operand.vmem [shape: f32[16,32], index: 0, kind: input, shape index: {}]
  %s1 = inlined_call_operand.vmem [shape: f32[16,2], index: 1, kind: input, shape index: {}]
  %s2 = inlined_call_operand.hbm [shape: bf16[32,512], index: 2, kind: input, shape index: {}]
  %s3 = inlined_call_operand.vmem [shape: bf16[2,512], index: 3, kind: input, shape index: {}]
  %s4 = inlined_call_operand.vmem [shape: f32[1,512], index: 4, kind: input, shape index: {}]
  %s5 = inlined_call_operand.hbm [shape: bf16[512,256], index: 5, kind: input, shape index: {}]
  %s6 = inlined_call_operand.vmem [shape: f32[1,256], index: 6, kind: input, shape index: {}]
  %s7 = inlined_call_operand.hbm [shape: bf16[256,128], index: 7, kind: input, shape index: {}]
  %s8 = inlined_call_operand.vmem [shape: f32[1,128], index: 8, kind: input, shape index: {}]
  %s9 = inlined_call_operand.hbm [shape: bf16[128,128], index: 9, kind: input, shape index: {}]
  %s10 = inlined_call_operand.vmem [shape: f32[1,128], index: 10, kind: input, shape index: {}]
  %s11 = inlined_call_operand.hbm [shape: f32[16,128], index: 11, kind: output, shape index: {}]
  %s12 = sld [smem:[#allocation0]]
  $region70: #{tpu_custom_call.1} parent=0
    _
  %s14 = ssub.s32 1, %s12
  %s15 = scalar_select 0, %s14, %s12
  $region1: #{tpu_custom_call.1} parent=0
    #allocation2 [shape = 'u8[32768]{0}', space=vmem, size = 0x8000, scoped, tag = 'input window, operand 2, single buffered']
    #allocation3 [shape = 's32[1]{0}', space=sflag, size = 0x4, scoped, tag = 'scoped memory for tpu_custom_call.1']
    #allocation4 [shape = 's32[1]{0}', space=sflag, size = 0x4, scoped, tag = 'scoped memory for tpu_custom_call.1']
    #allocation5 [shape = 'u8[262144]{0}', space=vmem, size = 0x40000, scoped, tag = 'input window, operand 5, single buffered']
    #allocation6 [shape = 's32[1]{0}', space=sflag, size = 0x4, scoped, tag = 'scoped memory for tpu_custom_call.1']
    #allocation7 [shape = 'u8[65536]{0}', space=vmem, size = 0x10000, scoped, tag = 'input window, operand 7, single buffered']
    #allocation8 [shape = 'u8[32768]{0}', space=vmem, size = 0x8000, scoped, tag = 'input window, operand 9, single buffered']
    #allocation9 [shape = 's32[1]{0}', space=sflag, size = 0x4, scoped, tag = 'scoped memory for tpu_custom_call.1']
    #allocation10 [shape = 'u8[8192]{0}', space=vmem, size = 0x2000, scoped, tag = 'output window, operand 0, single buffered']
    %16 = vsyncpa [#allocation3], 0
    %17 = vsyncpa [#allocation6], 0
    %18 = vsyncpa [#allocation9], 0
    %19 = vsyncpa [#allocation4], 0
    // Predicated region
    $region2: #{tpu_custom_call.1} parent=1 // pred_check
      _
    $region3: #{tpu_custom_call.1} parent=1 // pred_check_branch
      %21 = sbr.rel (0) target = $region5
    $region4: #{tpu_custom_call.1} parent=1 // pred_region
      _
    $region5: #{tpu_custom_call.1} parent=1 // pred_fallthru
      _
    // Predicated region
    $region6: #{tpu_custom_call.1} parent=1 // pred_check
      _
    $region7: #{tpu_custom_call.1} parent=1 // pred_check_branch
      %23 = sbr.rel (0) target = $region9
    $region8: #{tpu_custom_call.1} parent=1 // pred_region
      _
    $region9: #{tpu_custom_call.1} parent=1 // pred_fallthru
      _
    // Predicated region
    $region10: #{tpu_custom_call.1} parent=1 // pred_check
      _
    $region11: #{tpu_custom_call.1} parent=1 // pred_check_branch
      %25 = sbr.rel (0) target = $region13
    $region12: #{tpu_custom_call.1} parent=1 // pred_region
      %s27 = ssub.s32 1024, 1024
      %28 = vsyncadd [#allocation3], %s27
      %s29 = sshll.u32 [#allocation2], 4
      %s30 = int_to_ptr.vmem [resolvable:$true] %s29
      %35 = dma.hbm_to_vmem [thread:$0]  %s2, 1024, %s30, [#allocation3], 256, 256, 16
    $region13: #{tpu_custom_call.1} parent=1 // pred_fallthru
      _
    // Predicated region
    $region14: #{tpu_custom_call.1} parent=1 // pred_check
      _
    $region15: #{tpu_custom_call.1} parent=1 // pred_check_branch
      %37 = sbr.rel (0) target = $region17
    $region16: #{tpu_custom_call.1} parent=1 // pred_region
      _
    $region17: #{tpu_custom_call.1} parent=1 // pred_fallthru
      _
    // Predicated region
    $region18: #{tpu_custom_call.1} parent=1 // pred_check
      _
    $region19: #{tpu_custom_call.1} parent=1 // pred_check_branch
      %39 = sbr.rel (0) target = $region21
    $region20: #{tpu_custom_call.1} parent=1 // pred_region
      _
    $region21: #{tpu_custom_call.1} parent=1 // pred_fallthru
      _
    // Predicated region
    $region22: #{tpu_custom_call.1} parent=1 // pred_check
      _
    $region23: #{tpu_custom_call.1} parent=1 // pred_check_branch
      %41 = sbr.rel (0) target = $region25
    $region24: #{tpu_custom_call.1} parent=1 // pred_region
      %s43 = ssub.s32 8192, 8192
      %44 = vsyncadd [#allocation6], %s43
      %s45 = sshll.u32 [#allocation5], 4
      %s46 = int_to_ptr.vmem [resolvable:$true] %s45
      %51 = dma.hbm_to_vmem [thread:$0]  %s5, 8192, %s46, [#allocation6], 128, 128, 8
    $region25: #{tpu_custom_call.1} parent=1 // pred_fallthru
      _
    // Predicated region
    $region26: #{tpu_custom_call.1} parent=1 // pred_check
      _
    $region27: #{tpu_custom_call.1} parent=1 // pred_check_branch
      %53 = sbr.rel (0) target = $region29
    $region28: #{tpu_custom_call.1} parent=1 // pred_region
      _
    $region29: #{tpu_custom_call.1} parent=1 // pred_fallthru
      _
    // Predicated region
    $region30: #{tpu_custom_call.1} parent=1 // pred_check
      _
    $region31: #{tpu_custom_call.1} parent=1 // pred_check_branch
      %55 = sbr.rel (0) target = $region33
    $region32: #{tpu_custom_call.1} parent=1 // pred_region
      %s57 = ssub.s32 2048, 2048
      %58 = vsyncadd [#allocation6], %s57
      %s59 = sshll.u32 [#allocation7], 4
      %s60 = int_to_ptr.vmem [resolvable:$true] %s59
      %65 = dma.hbm_to_vmem [thread:$0]  %s7, 2048, %s60, [#allocation6], 64, 64, 4
    $region33: #{tpu_custom_call.1} parent=1 // pred_fallthru
      _
    // Predicated region
    $region34: #{tpu_custom_call.1} parent=1 // pred_check
      _
    $region35: #{tpu_custom_call.1} parent=1 // pred_check_branch
      %67 = sbr.rel (0) target = $region37
    $region36: #{tpu_custom_call.1} parent=1 // pred_region
      _
    $region37: #{tpu_custom_call.1} parent=1 // pred_fallthru
      _
    // Predicated region
    $region38: #{tpu_custom_call.1} parent=1 // pred_check
      _
    $region39: #{tpu_custom_call.1} parent=1 // pred_check_branch
      %69 = sbr.rel (0) target = $region41
    $region40: #{tpu_custom_call.1} parent=1 // pred_region
      %s71 = ssub.s32 1024, 1024
      %72 = vsyncadd [#allocation9], %s71
      %s73 = sshll.u32 [#allocation8], 4
      %s74 = int_to_ptr.vmem [resolvable:$true] %s73
      %79 = dma.hbm_to_vmem [thread:$0]  %s9, 1024, %s74, [#allocation9], 64, 64, 4
    $region41: #{tpu_custom_call.1} parent=1 // pred_fallthru
      _
    // Predicated region
    $region42: #{tpu_custom_call.1} parent=1 // pred_check
      _
    $region43: #{tpu_custom_call.1} parent=1 // pred_check_branch
      %81 = sbr.rel (0) target = $region45
    $region44: #{tpu_custom_call.1} parent=1 // pred_region
      _
    $region45: #{tpu_custom_call.1} parent=1 // pred_fallthru
      _
    // Predicated region
    $region46: #{tpu_custom_call.1} parent=1 // pred_check
      _
    $region47: #{tpu_custom_call.1} parent=1 // pred_check_branch
      %83 = sbr.rel (0) target = $region49
    $region48: #{tpu_custom_call.1} parent=1 // pred_region
      %84 = dma.done [#allocation3], 1024
    $region49: #{tpu_custom_call.1} parent=1 // pred_fallthru
      _
    // Predicated region
    $region50: #{tpu_custom_call.1} parent=1 // pred_check
      _
    $region51: #{tpu_custom_call.1} parent=1 // pred_check_branch
      %86 = sbr.rel (0) target = $region53
    $region52: #{tpu_custom_call.1} parent=1 // pred_region
      %87 = dma.done [#allocation6], 8192
    $region53: #{tpu_custom_call.1} parent=1 // pred_fallthru
      _
    // Predicated region
    $region54: #{tpu_custom_call.1} parent=1 // pred_check
      _
    $region55: #{tpu_custom_call.1} parent=1 // pred_check_branch
      %89 = sbr.rel (0) target = $region57
    $region56: #{tpu_custom_call.1} parent=1 // pred_region
      %90 = dma.done [#allocation6], 2048
    $region57: #{tpu_custom_call.1} parent=1 // pred_fallthru
      _
    // Predicated region
    $region58: #{tpu_custom_call.1} parent=1 // pred_check
      _
    $region59: #{tpu_custom_call.1} parent=1 // pred_check_branch
      %92 = sbr.rel (0) target = $region61
    $region60: #{tpu_custom_call.1} parent=1 // pred_region
      %93 = dma.done [#allocation9], 1024
    $region61: #{tpu_custom_call.1} parent=1 // pred_fallthru
      _
    %v95 = vld [vmem:[%s0] sm:$0xff]
    %v96 = vld [vmem:[%s0 + $0x8] sm:$0xff]
    %v97 = vpack.c.bf16 %v96, %v95
    %v98 = vld [vmem:[%s1] sm:$0xff]
    %v99 = vld [vmem:[%s1 + $0x8] sm:$0xff]
    %v100 = vpack.c.bf16 %v99, %v98
    %v101 = vld [vmem:[#allocation2] sm:$0xff]
    %v102 = vld [vmem:[#allocation2 + $0x8] sm:$0xff]
    %v103 = vld [vmem:[#allocation2 + $0x10] sm:$0xff]
    %v104 = vld [vmem:[#allocation2 + $0x18] sm:$0xff]
    %v105 = vld [vmem:[#allocation2 + $0x20] sm:$0xff]
    %v106 = vld [vmem:[#allocation2 + $0x28] sm:$0xff]
    %v107 = vld [vmem:[#allocation2 + $0x30] sm:$0xff]
    %v108 = vld [vmem:[#allocation2 + $0x38] sm:$0xff]
    %v109 = vld [vmem:[%s3] sm:$0xf]
    %v112 = vunpack.c.l.s4 1966171168
    %v113 = vunpack.c.0.s8 %v112
    %v114 = vlaneseq
    %v115 = vshrl.u32 %v114, 7
    %v116 = vsub.s32 %v113, %v115
    %v117 = vrot.slane %v109, %v116
    %v118 = vcombine.high %v117, %v117
    %v120 = vunpack.c.l.s4 1966171168
    %v121 = vunpack.c.0.s8 %v120
    %v122 = vlaneseq
    %v123 = vshrl.u32 %v122, 7
    %v124 = vsub.s32 %v121, %v123
    %v125 = vrot.slane %v117, %v124
    %v127 = vunpack.c.l.s4 1966171168
    %v128 = vunpack.c.0.s8 %v127
    %v129 = vlaneseq
    %v130 = vshrl.u32 %v129, 7
    %v131 = vsub.s32 %v128, %v130
    %v132 = vrot.slane %v118, %v131
    %v133 = vcombine.high %v125, %v125
    %v134 = vcombine.high %v132, %v132
    %vm135 = vcmask 15360
    %v137 = vsel %vm135, %v100, 0
    %vm139 = vcmask 1040384
    %v141 = vsel %vm139, %v125, 0
    %v144 = vsel %vm139, %v132, 0
    %v147 = vsel %vm139, %v133, 0
    %v150 = vsel %vm139, %v134, 0
    %152 = vmatprep.subr.bf16.mxu0 %v144
    %153 = vmatpush1.bf16.msra.mxu0 %v141
    %154 = vmatprep.subr.bf16.mxu0 0
    %155 = vmatpush1.bf16.msra.mxu0 0
    %156 = vmatprep.subr.bf16.mxu0 0
    %157 = vmatpush1.bf16.msra.mxu0 0
    %158 = vmatprep.subr.bf16.mxu0 0
    %159 = vmatpush1.bf16.msra.mxu0 0
    %160 = vmatprep.subr.bf16.mxu0 0
    %161 = vmatpush1.bf16.msra.mxu0 0
    %162 = vmatprep.subr.bf16.mxu0 0
    %163 = vmatpush1.bf16.msra.mxu0 0
    %164 = vmatprep.subr.bf16.mxu0 0
    %165 = vmatpush1.bf16.msra.mxu0 0
    %166 = vmatprep.subr.bf16.mxu0 0
    %167 = vmatpush1.bf16.msra.mxu0 0
    %168 = vmatprep.subr.bf16.mxu0 0
    %169 = vmatpush1.bf16.msra.mxu0 0
    %170 = vmatprep.subr.bf16.mxu0 0
    %171 = vmatpush1.bf16.msra.mxu0 0
    %172 = vmatprep.subr.bf16.mxu0 0
    %173 = vmatpush1.bf16.msra.mxu0 0
    %174 = vmatprep.subr.bf16.mxu0 0
    %175 = vmatpush1.bf16.msra.mxu0 0
    %176 = vmatprep.subr.bf16.mxu0 0
    %177 = vmatpush1.bf16.msra.mxu0 0
    %178 = vmatprep.subr.bf16.mxu0 0
    %179 = vmatpush1.bf16.msra.mxu0 0
    %180 = vmatprep.subr.bf16.mxu0 0
    %181 = vmatpush1.bf16.msra.mxu0 0
    %182 = vmatprep.subr.bf16.mxu0 0
    %183 = vmatpush1.bf16.msra.mxu0 0
    %184 = vmatprep.mubr.bf16.mxu0 0
    %185 = vmatmul.mubr.bf16.gmra.mrb[0].mxu0 %v137
    %v186 = vpop.f32.mrb[0].mxu0
    %v187 = vadd.f32 0.0, %v186
    %v188 = vpop.f32.mrb[0].mxu0
    %v189 = vadd.f32 0.0, %v188
    %v190 = vpop.f32.mrb[0].mxu0
    %v191 = vadd.f32 0.0, %v190
    %v192 = vpop.f32.mrb[0].mxu0
    %v193 = vadd.f32 0.0, %v192
    %194 = vdwg.mxu0
    %195 = vmatprep.subr.bf16.mxu0 %v150
    %196 = vmatpush1.bf16.msra.mxu0 %v147
    %197 = vmatprep.subr.bf16.mxu0 0
    %198 = vmatpush1.bf16.msra.mxu0 0
    %199 = vmatprep.subr.bf16.mxu0 0
    %200 = vmatpush1.bf16.msra.mxu0 0
    %201 = vmatprep.subr.bf16.mxu0 0
    %202 = vmatpush1.bf16.msra.mxu0 0
    %203 = vmatprep.subr.bf16.mxu0 0
    %204 = vmatpush1.bf16.msra.mxu0 0
    %205 = vmatprep.subr.bf16.mxu0 0
    %206 = vmatpush1.bf16.msra.mxu0 0
    %207 = vmatprep.subr.bf16.mxu0 0
    %208 = vmatpush1.bf16.msra.mxu0 0
    %209 = vmatprep.subr.bf16.mxu0 0
    %210 = vmatpush1.bf16.msra.mxu0 0
    %211 = vmatprep.subr.bf16.mxu0 0
    %212 = vmatpush1.bf16.msra.mxu0 0
    %213 = vmatprep.subr.bf16.mxu0 0
    %214 = vmatpush1.bf16.msra.mxu0 0
    %215 = vmatprep.subr.bf16.mxu0 0
    %216 = vmatpush1.bf16.msra.mxu0 0
    %217 = vmatprep.subr.bf16.mxu0 0
    %218 = vmatpush1.bf16.msra.mxu0 0
    %219 = vmatprep.subr.bf16.mxu0 0
    %220 = vmatpush1.bf16.msra.mxu0 0
    %221 = vmatprep.subr.bf16.mxu0 0
    %222 = vmatpush1.bf16.msra.mxu0 0
    %223 = vmatprep.subr.bf16.mxu0 0
    %224 = vmatpush1.bf16.msra.mxu0 0
    %225 = vmatprep.subr.bf16.mxu0 0
    %226 = vmatpush1.bf16.msra.mxu0 0
    %227 = vmatprep.mubr.bf16.mxu0 0
    %228 = vmatmul.mubr.bf16.gmra.mrb[0].mxu0 %v137
    %v229 = vpop.f32.mrb[0].mxu0
    %v230 = vadd.f32 0.0, %v229
    %v231 = vpop.f32.mrb[0].mxu0
    %v232 = vadd.f32 0.0, %v231
    %v233 = vpop.f32.mrb[0].mxu0
    %v234 = vadd.f32 0.0, %v233
    %v235 = vpop.f32.mrb[0].mxu0
    %v236 = vadd.f32 0.0, %v235
    %237 = vdwg.mxu0
    %v246 = vunpack.c.l.b16 %v101
    %v247 = vunpack.c.h.b16 %v101
    %v248 = vunpack.c.l.b16 %v102
    %v249 = vunpack.c.h.b16 %v102
    %v250 = vunpack.c.l.b16 %v103
    %v251 = vunpack.c.h.b16 %v103
    %v252 = vunpack.c.l.b16 %v104
    %v253 = vunpack.c.h.b16 %v104
    %v254 = vunpack.c.l.b16 %v105
    %v255 = vunpack.c.h.b16 %v105
    %v256 = vunpack.c.l.b16 %v106
    %v257 = vunpack.c.h.b16 %v106
    %v258 = vunpack.c.l.b16 %v107
    %v259 = vunpack.c.h.b16 %v107
    %v260 = vunpack.c.l.b16 %v108
    %v261 = vunpack.c.h.b16 %v108
    %v262 = vpack.c.b16 %v250, %v246
    %v263 = vpack.c.b16 %v251, %v247
    %v264 = vpack.c.b16 %v252, %v248
    %v265 = vpack.c.b16 %v253, %v249
    %v266 = vpack.c.b16 %v258, %v254
    %v267 = vpack.c.b16 %v259, %v255
    %v268 = vpack.c.b16 %v260, %v256
    %v269 = vpack.c.b16 %v261, %v257
    %vm278 = vcmask 261120
    %v280 = vsel %vm278, %v97, 0
    %282 = vmatprep.subr.bf16.mxu0 %v263
    %283 = vmatpush1.bf16.msra.mxu0 %v262
    %284 = vmatprep.subr.bf16.mxu0 %v267
    %285 = vmatpush1.bf16.msra.mxu0 %v266
    %286 = vmatprep.subr.bf16.mxu0 0
    %287 = vmatpush1.bf16.msra.mxu0 0
    %288 = vmatprep.subr.bf16.mxu0 0
    %289 = vmatpush1.bf16.msra.mxu0 0
    %290 = vmatprep.subr.bf16.mxu0 0
    %291 = vmatpush1.bf16.msra.mxu0 0
    %292 = vmatprep.subr.bf16.mxu0 0
    %293 = vmatpush1.bf16.msra.mxu0 0
    %294 = vmatprep.subr.bf16.mxu0 0
    %295 = vmatpush1.bf16.msra.mxu0 0
    %296 = vmatprep.subr.bf16.mxu0 0
    %297 = vmatpush1.bf16.msra.mxu0 0
    %298 = vmatprep.subr.bf16.mxu0 0
    %299 = vmatpush1.bf16.msra.mxu0 0
    %300 = vmatprep.subr.bf16.mxu0 0
    %301 = vmatpush1.bf16.msra.mxu0 0
    %302 = vmatprep.subr.bf16.mxu0 0
    %303 = vmatpush1.bf16.msra.mxu0 0
    %304 = vmatprep.subr.bf16.mxu0 0
    %305 = vmatpush1.bf16.msra.mxu0 0
    %306 = vmatprep.subr.bf16.mxu0 0
    %307 = vmatpush1.bf16.msra.mxu0 0
    %308 = vmatprep.subr.bf16.mxu0 0
    %309 = vmatpush1.bf16.msra.mxu0 0
    %310 = vmatprep.subr.bf16.mxu0 0
    %311 = vmatpush1.bf16.msra.mxu0 0
    %312 = vmatprep.subr.bf16.mxu0 0
    %313 = vmatpush1.bf16.msra.mxu0 0
    %314 = vmatprep.mubr.bf16.mxu0 0
    %315 = vmatmul.mubr.bf16.gmra.mrb[0].mxu0 %v280
    %v316 = vpop.f32.mrb[0].mxu0
    %v317 = vadd.f32 %v187, %v316
    %v318 = vpop.f32.mrb[0].mxu0
    %v319 = vadd.f32 %v189, %v318
    %v320 = vpop.f32.mrb[0].mxu0
    %v321 = vadd.f32 %v191, %v320
    %v322 = vpop.f32.mrb[0].mxu0
    %v323 = vadd.f32 %v193, %v322
    %324 = vdwg.mxu0
    %325 = vmatprep.subr.bf16.mxu0 %v265
    %326 = vmatpush1.bf16.msra.mxu0 %v264
    %327 = vmatprep.subr.bf16.mxu0 %v269
    %328 = vmatpush1.bf16.msra.mxu0 %v268
    %329 = vmatprep.subr.bf16.mxu0 0
    %330 = vmatpush1.bf16.msra.mxu0 0
    %331 = vmatprep.subr.bf16.mxu0 0
    %332 = vmatpush1.bf16.msra.mxu0 0
    %333 = vmatprep.subr.bf16.mxu0 0
    %334 = vmatpush1.bf16.msra.mxu0 0
    %335 = vmatprep.subr.bf16.mxu0 0
    %336 = vmatpush1.bf16.msra.mxu0 0
    %337 = vmatprep.subr.bf16.mxu0 0
    %338 = vmatpush1.bf16.msra.mxu0 0
    %339 = vmatprep.subr.bf16.mxu0 0
    %340 = vmatpush1.bf16.msra.mxu0 0
    %341 = vmatprep.subr.bf16.mxu0 0
    %342 = vmatpush1.bf16.msra.mxu0 0
    %343 = vmatprep.subr.bf16.mxu0 0
    %344 = vmatpush1.bf16.msra.mxu0 0
    %345 = vmatprep.subr.bf16.mxu0 0
    %346 = vmatpush1.bf16.msra.mxu0 0
    %347 = vmatprep.subr.bf16.mxu0 0
    %348 = vmatpush1.bf16.msra.mxu0 0
    %349 = vmatprep.subr.bf16.mxu0 0
    %350 = vmatpush1.bf16.msra.mxu0 0
    %351 = vmatprep.subr.bf16.mxu0 0
    %352 = vmatpush1.bf16.msra.mxu0 0
    %353 = vmatprep.subr.bf16.mxu0 0
    %354 = vmatpush1.bf16.msra.mxu0 0
    %355 = vmatprep.subr.bf16.mxu0 0
    %356 = vmatpush1.bf16.msra.mxu0 0
    %357 = vmatprep.mubr.bf16.mxu0 0
    %358 = vmatmul.mubr.bf16.gmra.mrb[0].mxu0 %v280
    %v359 = vpop.f32.mrb[0].mxu0
    %v360 = vadd.f32 %v230, %v359
    %v361 = vpop.f32.mrb[0].mxu0
    %v362 = vadd.f32 %v232, %v361
    %v363 = vpop.f32.mrb[0].mxu0
    %v364 = vadd.f32 %v234, %v363
    %v365 = vpop.f32.mrb[0].mxu0
    %v366 = vadd.f32 %v236, %v365
    %367 = vdwg.mxu0
    %v368 = vld [vmem:[%s4] sm:$0xf]
    %v370 = vlaneseq
    %v371 = vshrl.u32 %v370, 7
    %v372 = vsub.s32 0, %v371
    %v373 = vrot.slane %v368, %v372
    %v374 = vlaneseq
    %v375 = vshrl.u32 %v374, 7
    %v376 = vsub.s32 1, %v375
    %v377 = vrot.slane %v368, %v376
    %v378 = vlaneseq
    %v379 = vshrl.u32 %v378, 7
    %v380 = vsub.s32 2, %v379
    %v381 = vrot.slane %v368, %v380
    %v382 = vlaneseq
    %v383 = vshrl.u32 %v382, 7
    %v384 = vsub.s32 3, %v383
    %v385 = vrot.slane %v368, %v384
    %v390 = vadd.f32 %v317, %v373
    %v391 = vadd.f32 %v319, %v377
    %v392 = vadd.f32 %v360, %v381
    %v393 = vadd.f32 %v362, %v385
    %v394 = vadd.f32 %v321, %v373
    %v395 = vadd.f32 %v323, %v377
    %v396 = vadd.f32 %v364, %v381
    %v397 = vadd.f32 %v366, %v385
    %v398 = vmax.f32 %v390, 0.0
    %v399 = vmax.f32 %v391, 0.0
    %v400 = vmax.f32 %v392, 0.0
    %v401 = vmax.f32 %v393, 0.0
    %v402 = vmax.f32 %v394, 0.0
    %v403 = vmax.f32 %v395, 0.0
    %v404 = vmax.f32 %v396, 0.0
    %v405 = vmax.f32 %v397, 0.0
    %v406 = vpack.c.bf16 %v402, %v398
    %v407 = vpack.c.bf16 %v403, %v399
    %v408 = vpack.c.bf16 %v404, %v400
    %v409 = vpack.c.bf16 %v405, %v401
    %v410 = vld [vmem:[#allocation5] sm:$0xff]
    %v411 = vld [vmem:[#allocation5 + $0x8] sm:$0xff]
    %v412 = vld [vmem:[#allocation5 + $0x10] sm:$0xff]
    %v413 = vld [vmem:[#allocation5 + $0x18] sm:$0xff]
    %v414 = vld [vmem:[#allocation5 + $0x20] sm:$0xff]
    %v415 = vld [vmem:[#allocation5 + $0x28] sm:$0xff]
    %v416 = vld [vmem:[#allocation5 + $0x30] sm:$0xff]
    %v417 = vld [vmem:[#allocation5 + $0x38] sm:$0xff]
    %v418 = vld [vmem:[#allocation5 + $0x40] sm:$0xff]
    %v419 = vld [vmem:[#allocation5 + $0x48] sm:$0xff]
    %v420 = vld [vmem:[#allocation5 + $0x50] sm:$0xff]
    %v421 = vld [vmem:[#allocation5 + $0x58] sm:$0xff]
    %v422 = vld [vmem:[#allocation5 + $0x60] sm:$0xff]
    %v423 = vld [vmem:[#allocation5 + $0x68] sm:$0xff]
    %v424 = vld [vmem:[#allocation5 + $0x70] sm:$0xff]
    %v425 = vld [vmem:[#allocation5 + $0x78] sm:$0xff]
    %v426 = vld [vmem:[#allocation5 + $0x80] sm:$0xff]
    %v427 = vld [vmem:[#allocation5 + $0x88] sm:$0xff]
    %v428 = vld [vmem:[#allocation5 + $0x90] sm:$0xff]
    %v429 = vld [vmem:[#allocation5 + $0x98] sm:$0xff]
    %v430 = vld [vmem:[#allocation5 + $0xa0] sm:$0xff]
    %v431 = vld [vmem:[#allocation5 + $0xa8] sm:$0xff]
    %v432 = vld [vmem:[#allocation5 + $0xb0] sm:$0xff]
    %v433 = vld [vmem:[#allocation5 + $0xb8] sm:$0xff]
    %v434 = vld [vmem:[#allocation5 + $0xc0] sm:$0xff]
    %v435 = vld [vmem:[#allocation5 + $0xc8] sm:$0xff]
    %v436 = vld [vmem:[#allocation5 + $0xd0] sm:$0xff]
    %v437 = vld [vmem:[#allocation5 + $0xd8] sm:$0xff]
    %v438 = vld [vmem:[#allocation5 + $0xe0] sm:$0xff]
    %v439 = vld [vmem:[#allocation5 + $0xe8] sm:$0xff]
    %v440 = vld [vmem:[#allocation5 + $0xf0] sm:$0xff]
    %v441 = vld [vmem:[#allocation5 + $0xf8] sm:$0xff]
    %v442 = vld [vmem:[#allocation5 + $0x100] sm:$0xff]
    %v443 = vld [vmem:[#allocation5 + $0x108] sm:$0xff]
    %v444 = vld [vmem:[#allocation5 + $0x110] sm:$0xff]
    %v445 = vld [vmem:[#allocation5 + $0x118] sm:$0xff]
    %v446 = vld [vmem:[#allocation5 + $0x120] sm:$0xff]
    %v447 = vld [vmem:[#allocation5 + $0x128] sm:$0xff]
    %v448 = vld [vmem:[#allocation5 + $0x130] sm:$0xff]
    %v449 = vld [vmem:[#allocation5 + $0x138] sm:$0xff]
    %v450 = vld [vmem:[#allocation5 + $0x140] sm:$0xff]
    %v451 = vld [vmem:[#allocation5 + $0x148] sm:$0xff]
    %v452 = vld [vmem:[#allocation5 + $0x150] sm:$0xff]
    %v453 = vld [vmem:[#allocation5 + $0x158] sm:$0xff]
    %v454 = vld [vmem:[#allocation5 + $0x160] sm:$0xff]
    %v455 = vld [vmem:[#allocation5 + $0x168] sm:$0xff]
    %v456 = vld [vmem:[#allocation5 + $0x170] sm:$0xff]
    %v457 = vld [vmem:[#allocation5 + $0x178] sm:$0xff]
    %v458 = vld [vmem:[#allocation5 + $0x180] sm:$0xff]
    %v459 = vld [vmem:[#allocation5 + $0x188] sm:$0xff]
    %v460 = vld [vmem:[#allocation5 + $0x190] sm:$0xff]
    %v461 = vld [vmem:[#allocation5 + $0x198] sm:$0xff]
    %v462 = vld [vmem:[#allocation5 + $0x1a0] sm:$0xff]
    %v463 = vld [vmem:[#allocation5 + $0x1a8] sm:$0xff]
    %v464 = vld [vmem:[#allocation5 + $0x1b0] sm:$0xff]
    %v465 = vld [vmem:[#allocation5 + $0x1b8] sm:$0xff]
    %v466 = vld [vmem:[#allocation5 + $0x1c0] sm:$0xff]
    %v467 = vld [vmem:[#allocation5 + $0x1c8] sm:$0xff]
    %v468 = vld [vmem:[#allocation5 + $0x1d0] sm:$0xff]
    %v469 = vld [vmem:[#allocation5 + $0x1d8] sm:$0xff]
    %v470 = vld [vmem:[#allocation5 + $0x1e0] sm:$0xff]
    %v471 = vld [vmem:[#allocation5 + $0x1e8] sm:$0xff]
    %v472 = vld [vmem:[#allocation5 + $0x1f0] sm:$0xff]
    %v473 = vld [vmem:[#allocation5 + $0x1f8] sm:$0xff]
    %v474 = vld [vmem:[%s6] sm:$0x3]
    %v476 = vlaneseq
    %v477 = vshrl.u32 %v476, 7
    %v478 = vsub.s32 0, %v477
    %v479 = vrot.slane %v474, %v478
    %v480 = vlaneseq
    %v481 = vshrl.u32 %v480, 7
    %v482 = vsub.s32 1, %v481
    %v483 = vrot.slane %v474, %v482
    %v550 = vunpack.c.l.b16 %v410
    %v551 = vunpack.c.h.b16 %v410
    %v552 = vunpack.c.l.b16 %v411
    %v553 = vunpack.c.h.b16 %v411
    %v554 = vunpack.c.l.b16 %v412
    %v555 = vunpack.c.h.b16 %v412
    %v556 = vunpack.c.l.b16 %v413
    %v557 = vunpack.c.h.b16 %v413
    %v558 = vunpack.c.l.b16 %v414
    %v559 = vunpack.c.h.b16 %v414
    %v560 = vunpack.c.l.b16 %v415
    %v561 = vunpack.c.h.b16 %v415
    %v562 = vunpack.c.l.b16 %v416
    %v563 = vunpack.c.h.b16 %v416
    %v564 = vunpack.c.l.b16 %v417
    %v565 = vunpack.c.h.b16 %v417
    %v566 = vunpack.c.l.b16 %v418
    %v567 = vunpack.c.h.b16 %v418
    %v568 = vunpack.c.l.b16 %v419
    %v569 = vunpack.c.h.b16 %v419
    %v570 = vunpack.c.l.b16 %v420
    %v571 = vunpack.c.h.b16 %v420
    %v572 = vunpack.c.l.b16 %v421
    %v573 = vunpack.c.h.b16 %v421
    %v574 = vunpack.c.l.b16 %v422
    %v575 = vunpack.c.h.b16 %v422
    %v576 = vunpack.c.l.b16 %v423
    %v577 = vunpack.c.h.b16 %v423
    %v578 = vunpack.c.l.b16 %v424
    %v579 = vunpack.c.h.b16 %v424
    %v580 = vunpack.c.l.b16 %v425
    %v581 = vunpack.c.h.b16 %v425
    %v582 = vunpack.c.l.b16 %v426
    %v583 = vunpack.c.h.b16 %v426
    %v584 = vunpack.c.l.b16 %v427
    %v585 = vunpack.c.h.b16 %v427
    %v586 = vunpack.c.l.b16 %v428
    %v587 = vunpack.c.h.b16 %v428
    %v588 = vunpack.c.l.b16 %v429
    %v589 = vunpack.c.h.b16 %v429
    %v590 = vunpack.c.l.b16 %v430
    %v591 = vunpack.c.h.b16 %v430
    %v592 = vunpack.c.l.b16 %v431
    %v593 = vunpack.c.h.b16 %v431
    %v594 = vunpack.c.l.b16 %v432
    %v595 = vunpack.c.h.b16 %v432
    %v596 = vunpack.c.l.b16 %v433
    %v597 = vunpack.c.h.b16 %v433
    %v598 = vunpack.c.l.b16 %v434
    %v599 = vunpack.c.h.b16 %v434
    %v600 = vunpack.c.l.b16 %v435
    %v601 = vunpack.c.h.b16 %v435
    %v602 = vunpack.c.l.b16 %v436
    %v603 = vunpack.c.h.b16 %v436
    %v604 = vunpack.c.l.b16 %v437
    %v605 = vunpack.c.h.b16 %v437
    %v606 = vunpack.c.l.b16 %v438
    %v607 = vunpack.c.h.b16 %v438
    %v608 = vunpack.c.l.b16 %v439
    %v609 = vunpack.c.h.b16 %v439
    %v610 = vunpack.c.l.b16 %v440
    %v611 = vunpack.c.h.b16 %v440
    %v612 = vunpack.c.l.b16 %v441
    %v613 = vunpack.c.h.b16 %v441
    %v614 = vunpack.c.l.b16 %v442
    %v615 = vunpack.c.h.b16 %v442
    %v616 = vunpack.c.l.b16 %v443
    %v617 = vunpack.c.h.b16 %v443
    %v618 = vunpack.c.l.b16 %v444
    %v619 = vunpack.c.h.b16 %v444
    %v620 = vunpack.c.l.b16 %v445
    %v621 = vunpack.c.h.b16 %v445
    %v622 = vunpack.c.l.b16 %v446
    %v623 = vunpack.c.h.b16 %v446
    %v624 = vunpack.c.l.b16 %v447
    %v625 = vunpack.c.h.b16 %v447
    %v626 = vunpack.c.l.b16 %v448
    %v627 = vunpack.c.h.b16 %v448
    %v628 = vunpack.c.l.b16 %v449
    %v629 = vunpack.c.h.b16 %v449
    %v630 = vunpack.c.l.b16 %v450
    %v631 = vunpack.c.h.b16 %v450
    %v632 = vunpack.c.l.b16 %v451
    %v633 = vunpack.c.h.b16 %v451
    %v634 = vunpack.c.l.b16 %v452
    %v635 = vunpack.c.h.b16 %v452
    %v636 = vunpack.c.l.b16 %v453
    %v637 = vunpack.c.h.b16 %v453
    %v638 = vunpack.c.l.b16 %v454
    %v639 = vunpack.c.h.b16 %v454
    %v640 = vunpack.c.l.b16 %v455
    %v641 = vunpack.c.h.b16 %v455
    %v642 = vunpack.c.l.b16 %v456
    %v643 = vunpack.c.h.b16 %v456
    %v644 = vunpack.c.l.b16 %v457
    %v645 = vunpack.c.h.b16 %v457
    %v646 = vunpack.c.l.b16 %v458
    %v647 = vunpack.c.h.b16 %v458
    %v648 = vunpack.c.l.b16 %v459
    %v649 = vunpack.c.h.b16 %v459
    %v650 = vunpack.c.l.b16 %v460
    %v651 = vunpack.c.h.b16 %v460
    %v652 = vunpack.c.l.b16 %v461
    %v653 = vunpack.c.h.b16 %v461
    %v654 = vunpack.c.l.b16 %v462
    %v655 = vunpack.c.h.b16 %v462
    %v656 = vunpack.c.l.b16 %v463
    %v657 = vunpack.c.h.b16 %v463
    %v658 = vunpack.c.l.b16 %v464
    %v659 = vunpack.c.h.b16 %v464
    %v660 = vunpack.c.l.b16 %v465
    %v661 = vunpack.c.h.b16 %v465
    %v662 = vunpack.c.l.b16 %v466
    %v663 = vunpack.c.h.b16 %v466
    %v664 = vunpack.c.l.b16 %v467
    %v665 = vunpack.c.h.b16 %v467
    %v666 = vunpack.c.l.b16 %v468
    %v667 = vunpack.c.h.b16 %v468
    %v668 = vunpack.c.l.b16 %v469
    %v669 = vunpack.c.h.b16 %v469
    %v670 = vunpack.c.l.b16 %v470
    %v671 = vunpack.c.h.b16 %v470
    %v672 = vunpack.c.l.b16 %v471
    %v673 = vunpack.c.h.b16 %v471
    %v674 = vunpack.c.l.b16 %v472
    %v675 = vunpack.c.h.b16 %v472
    %v676 = vunpack.c.l.b16 %v473
    %v677 = vunpack.c.h.b16 %v473
    %v678 = vpack.c.b16 %v552, %v550
    %v679 = vpack.c.b16 %v553, %v551
    %v680 = vpack.c.b16 %v556, %v554
    %v681 = vpack.c.b16 %v557, %v555
    %v682 = vpack.c.b16 %v560, %v558
    %v683 = vpack.c.b16 %v561, %v559
    %v684 = vpack.c.b16 %v564, %v562
    %v685 = vpack.c.b16 %v565, %v563
    %v686 = vpack.c.b16 %v568, %v566
    %v687 = vpack.c.b16 %v569, %v567
    %v688 = vpack.c.b16 %v572, %v570
    %v689 = vpack.c.b16 %v573, %v571
    %v690 = vpack.c.b16 %v576, %v574
    %v691 = vpack.c.b16 %v577, %v575
    %v692 = vpack.c.b16 %v580, %v578
    %v693 = vpack.c.b16 %v581, %v579
    %v694 = vpack.c.b16 %v584, %v582
    %v695 = vpack.c.b16 %v585, %v583
    %v696 = vpack.c.b16 %v588, %v586
    %v697 = vpack.c.b16 %v589, %v587
    %v698 = vpack.c.b16 %v592, %v590
    %v699 = vpack.c.b16 %v593, %v591
    %v700 = vpack.c.b16 %v596, %v594
    %v701 = vpack.c.b16 %v597, %v595
    %v702 = vpack.c.b16 %v600, %v598
    %v703 = vpack.c.b16 %v601, %v599
    %v704 = vpack.c.b16 %v604, %v602
    %v705 = vpack.c.b16 %v605, %v603
    %v706 = vpack.c.b16 %v608, %v606
    %v707 = vpack.c.b16 %v609, %v607
    %v708 = vpack.c.b16 %v612, %v610
    %v709 = vpack.c.b16 %v613, %v611
    %v710 = vpack.c.b16 %v616, %v614
    %v711 = vpack.c.b16 %v617, %v615
    %v712 = vpack.c.b16 %v620, %v618
    %v713 = vpack.c.b16 %v621, %v619
    %v714 = vpack.c.b16 %v624, %v622
    %v715 = vpack.c.b16 %v625, %v623
    %v716 = vpack.c.b16 %v628, %v626
    %v717 = vpack.c.b16 %v629, %v627
    %v718 = vpack.c.b16 %v632, %v630
    %v719 = vpack.c.b16 %v633, %v631
    %v720 = vpack.c.b16 %v636, %v634
    %v721 = vpack.c.b16 %v637, %v635
    %v722 = vpack.c.b16 %v640, %v638
    %v723 = vpack.c.b16 %v641, %v639
    %v724 = vpack.c.b16 %v644, %v642
    %v725 = vpack.c.b16 %v645, %v643
    %v726 = vpack.c.b16 %v648, %v646
    %v727 = vpack.c.b16 %v649, %v647
    %v728 = vpack.c.b16 %v652, %v650
    %v729 = vpack.c.b16 %v653, %v651
    %v730 = vpack.c.b16 %v656, %v654
    %v731 = vpack.c.b16 %v657, %v655
    %v732 = vpack.c.b16 %v660, %v658
    %v733 = vpack.c.b16 %v661, %v659
    %v734 = vpack.c.b16 %v664, %v662
    %v735 = vpack.c.b16 %v665, %v663
    %v736 = vpack.c.b16 %v668, %v666
    %v737 = vpack.c.b16 %v669, %v667
    %v738 = vpack.c.b16 %v672, %v670
    %v739 = vpack.c.b16 %v673, %v671
    %v740 = vpack.c.b16 %v676, %v674
    %v741 = vpack.c.b16 %v677, %v675
    %806 = vmatprep.subr.bf16.mxu0 %v679
    %807 = vmatpush1.bf16.msra.mxu0 %v678
    %808 = vmatprep.subr.bf16.mxu0 %v681
    %809 = vmatpush1.bf16.msra.mxu0 %v680
    %810 = vmatprep.subr.bf16.mxu0 %v683
    %811 = vmatpush1.bf16.msra.mxu0 %v682
    %812 = vmatprep.subr.bf16.mxu0 %v685
    %813 = vmatpush1.bf16.msra.mxu0 %v684
    %814 = vmatprep.subr.bf16.mxu0 %v687
    %815 = vmatpush1.bf16.msra.mxu0 %v686
    %816 = vmatprep.subr.bf16.mxu0 %v689
    %817 = vmatpush1.bf16.msra.mxu0 %v688
    %818 = vmatprep.subr.bf16.mxu0 %v691
    %819 = vmatpush1.bf16.msra.mxu0 %v690
    %820 = vmatprep.subr.bf16.mxu0 %v693
    %821 = vmatpush1.bf16.msra.mxu0 %v692
    %822 = vmatprep.subr.bf16.mxu0 %v695
    %823 = vmatpush1.bf16.msra.mxu0 %v694
    %824 = vmatprep.subr.bf16.mxu0 %v697
    %825 = vmatpush1.bf16.msra.mxu0 %v696
    %826 = vmatprep.subr.bf16.mxu0 %v699
    %827 = vmatpush1.bf16.msra.mxu0 %v698
    %828 = vmatprep.subr.bf16.mxu0 %v701
    %829 = vmatpush1.bf16.msra.mxu0 %v700
    %830 = vmatprep.subr.bf16.mxu0 %v703
    %831 = vmatpush1.bf16.msra.mxu0 %v702
    %832 = vmatprep.subr.bf16.mxu0 %v705
    %833 = vmatpush1.bf16.msra.mxu0 %v704
    %834 = vmatprep.subr.bf16.mxu0 %v707
    %835 = vmatpush1.bf16.msra.mxu0 %v706
    %836 = vmatprep.subr.bf16.mxu0 %v709
    %837 = vmatpush1.bf16.msra.mxu0 %v708
    %838 = vmatprep.mubr.bf16.mxu0 %v407
    %839 = vmatmul.mubr.bf16.gmra.mrb[0].mxu0 %v406
    %v840 = vpop.f32.mrb[0].mxu0
    %v841 = vadd.f32 %v479, %v840
    %v842 = vpop.f32.mrb[0].mxu0
    %v843 = vadd.f32 %v483, %v842
    %v844 = vpop.f32.mrb[0].mxu0
    %v845 = vadd.f32 %v479, %v844
    %v846 = vpop.f32.mrb[0].mxu0
    %v847 = vadd.f32 %v483, %v846
    %848 = vdwg.mxu0
    %849 = vmatprep.subr.bf16.mxu0 %v711
    %850 = vmatpush1.bf16.msra.mxu0 %v710
    %851 = vmatprep.subr.bf16.mxu0 %v713
    %852 = vmatpush1.bf16.msra.mxu0 %v712
    %853 = vmatprep.subr.bf16.mxu0 %v715
    %854 = vmatpush1.bf16.msra.mxu0 %v714
    %855 = vmatprep.subr.bf16.mxu0 %v717
    %856 = vmatpush1.bf16.msra.mxu0 %v716
    %857 = vmatprep.subr.bf16.mxu0 %v719
    %858 = vmatpush1.bf16.msra.mxu0 %v718
    %859 = vmatprep.subr.bf16.mxu0 %v721
    %860 = vmatpush1.bf16.msra.mxu0 %v720
    %861 = vmatprep.subr.bf16.mxu0 %v723
    %862 = vmatpush1.bf16.msra.mxu0 %v722
    %863 = vmatprep.subr.bf16.mxu0 %v725
    %864 = vmatpush1.bf16.msra.mxu0 %v724
    %865 = vmatprep.subr.bf16.mxu0 %v727
    %866 = vmatpush1.bf16.msra.mxu0 %v726
    %867 = vmatprep.subr.bf16.mxu0 %v729
    %868 = vmatpush1.bf16.msra.mxu0 %v728
    %869 = vmatprep.subr.bf16.mxu0 %v731
    %870 = vmatpush1.bf16.msra.mxu0 %v730
    %871 = vmatprep.subr.bf16.mxu0 %v733
    %872 = vmatpush1.bf16.msra.mxu0 %v732
    %873 = vmatprep.subr.bf16.mxu0 %v735
    %874 = vmatpush1.bf16.msra.mxu0 %v734
    %875 = vmatprep.subr.bf16.mxu0 %v737
    %876 = vmatpush1.bf16.msra.mxu0 %v736
    %877 = vmatprep.subr.bf16.mxu0 %v739
    %878 = vmatpush1.bf16.msra.mxu0 %v738
    %879 = vmatprep.subr.bf16.mxu0 %v741
    %880 = vmatpush1.bf16.msra.mxu0 %v740
    %881 = vmatprep.mubr.bf16.mxu0 %v409
    %882 = vmatmul.mubr.bf16.gmra.mrb[0].mxu0 %v408
    %v883 = vpop.f32.mrb[0].mxu0
    %v884 = vadd.f32 %v841, %v883
    %v885 = vpop.f32.mrb[0].mxu0
    %v886 = vadd.f32 %v843, %v885
    %v887 = vpop.f32.mrb[0].mxu0
    %v888 = vadd.f32 %v845, %v887
    %v889 = vpop.f32.mrb[0].mxu0
    %v890 = vadd.f32 %v847, %v889
    %891 = vdwg.mxu0
    %v892 = vmax.f32 %v884, 0.0
    %v893 = vmax.f32 %v886, 0.0
    %v894 = vmax.f32 %v888, 0.0
    %v895 = vmax.f32 %v890, 0.0
    %v896 = vpack.c.bf16 %v894, %v892
    %v897 = vpack.c.bf16 %v895, %v893
    %v898 = vld [vmem:[#allocation7] sm:$0xf]
    %v899 = vld [vmem:[#allocation7 + $0x4] sm:$0xf]
    %v900 = vld [vmem:[#allocation7 + $0x8] sm:$0xf]
    %v901 = vld [vmem:[#allocation7 + $0xc] sm:$0xf]
    %v902 = vld [vmem:[#allocation7 + $0x10] sm:$0xf]
    %v903 = vld [vmem:[#allocation7 + $0x14] sm:$0xf]
    %v904 = vld [vmem:[#allocation7 + $0x18] sm:$0xf]
    %v905 = vld [vmem:[#allocation7 + $0x1c] sm:$0xf]
    %v906 = vld [vmem:[#allocation7 + $0x20] sm:$0xf]
    %v907 = vld [vmem:[#allocation7 + $0x24] sm:$0xf]
    %v908 = vld [vmem:[#allocation7 + $0x28] sm:$0xf]
    %v909 = vld [vmem:[#allocation7 + $0x2c] sm:$0xf]
    %v910 = vld [vmem:[#allocation7 + $0x30] sm:$0xf]
    %v911 = vld [vmem:[#allocation7 + $0x34] sm:$0xf]
    %v912 = vld [vmem:[#allocation7 + $0x38] sm:$0xf]
    %v913 = vld [vmem:[#allocation7 + $0x3c] sm:$0xf]
    %v914 = vld [vmem:[#allocation7 + $0x40] sm:$0xf]
    %v915 = vld [vmem:[#allocation7 + $0x44] sm:$0xf]
    %v916 = vld [vmem:[#allocation7 + $0x48] sm:$0xf]
    %v917 = vld [vmem:[#allocation7 + $0x4c] sm:$0xf]
    %v918 = vld [vmem:[#allocation7 + $0x50] sm:$0xf]
    %v919 = vld [vmem:[#allocation7 + $0x54] sm:$0xf]
    %v920 = vld [vmem:[#allocation7 + $0x58] sm:$0xf]
    %v921 = vld [vmem:[#allocation7 + $0x5c] sm:$0xf]
    %v922 = vld [vmem:[#allocation7 + $0x60] sm:$0xf]
    %v923 = vld [vmem:[#allocation7 + $0x64] sm:$0xf]
    %v924 = vld [vmem:[#allocation7 + $0x68] sm:$0xf]
    %v925 = vld [vmem:[#allocation7 + $0x6c] sm:$0xf]
    %v926 = vld [vmem:[#allocation7 + $0x70] sm:$0xf]
    %v927 = vld [vmem:[#allocation7 + $0x74] sm:$0xf]
    %v928 = vld [vmem:[#allocation7 + $0x78] sm:$0xf]
    %v929 = vld [vmem:[#allocation7 + $0x7c] sm:$0xf]
    %v930 = vld [vmem:[%s8] sm:$0x1]
    %v932 = vlaneseq
    %v933 = vshrl.u32 %v932, 7
    %v934 = vsub.s32 0, %v933
    %v935 = vrot.slane %v930, %v934
    %v969 = vunpack.c.l.b16 %v898
    %v970 = vunpack.c.l.b16 %v899
    %v971 = vunpack.c.l.b16 %v900
    %v972 = vunpack.c.l.b16 %v901
    %v973 = vunpack.c.l.b16 %v902
    %v974 = vunpack.c.l.b16 %v903
    %v975 = vunpack.c.l.b16 %v904
    %v976 = vunpack.c.l.b16 %v905
    %v977 = vunpack.c.l.b16 %v906
    %v978 = vunpack.c.l.b16 %v907
    %v979 = vunpack.c.l.b16 %v908
    %v980 = vunpack.c.l.b16 %v909
    %v981 = vunpack.c.l.b16 %v910
    %v982 = vunpack.c.l.b16 %v911
    %v983 = vunpack.c.l.b16 %v912
    %v984 = vunpack.c.l.b16 %v913
    %v985 = vunpack.c.l.b16 %v914
    %v986 = vunpack.c.l.b16 %v915
    %v987 = vunpack.c.l.b16 %v916
    %v988 = vunpack.c.l.b16 %v917
    %v989 = vunpack.c.l.b16 %v918
    %v990 = vunpack.c.l.b16 %v919
    %v991 = vunpack.c.l.b16 %v920
    %v992 = vunpack.c.l.b16 %v921
    %v993 = vunpack.c.l.b16 %v922
    %v994 = vunpack.c.l.b16 %v923
    %v995 = vunpack.c.l.b16 %v924
    %v996 = vunpack.c.l.b16 %v925
    %v997 = vunpack.c.l.b16 %v926
    %v998 = vunpack.c.l.b16 %v927
    %v999 = vunpack.c.l.b16 %v928
    %v1000 = vunpack.c.l.b16 %v929
    %v1001 = vpack.c.b16 %v970, %v969
    %v1002 = vpack.c.b16 %v972, %v971
    %v1003 = vpack.c.b16 %v974, %v973
    %v1004 = vpack.c.b16 %v976, %v975
    %v1005 = vpack.c.b16 %v978, %v977
    %v1006 = vpack.c.b16 %v980, %v979
    %v1007 = vpack.c.b16 %v982, %v981
    %v1008 = vpack.c.b16 %v984, %v983
    %v1009 = vpack.c.b16 %v986, %v985
    %v1010 = vpack.c.b16 %v988, %v987
    %v1011 = vpack.c.b16 %v990, %v989
    %v1012 = vpack.c.b16 %v992, %v991
    %v1013 = vpack.c.b16 %v994, %v993
    %v1014 = vpack.c.b16 %v996, %v995
    %v1015 = vpack.c.b16 %v998, %v997
    %v1016 = vpack.c.b16 %v1000, %v999
    %1033 = vmatprep.subr.bf16.mxu0 0
    %1034 = vmatpush1.bf16.msra.mxu0 %v1001
    %1035 = vmatprep.subr.bf16.mxu0 0
    %1036 = vmatpush1.bf16.msra.mxu0 %v1002
    %1037 = vmatprep.subr.bf16.mxu0 0
    %1038 = vmatpush1.bf16.msra.mxu0 %v1003
    %1039 = vmatprep.subr.bf16.mxu0 0
    %1040 = vmatpush1.bf16.msra.mxu0 %v1004
    %1041 = vmatprep.subr.bf16.mxu0 0
    %1042 = vmatpush1.bf16.msra.mxu0 %v1005
    %1043 = vmatprep.subr.bf16.mxu0 0
    %1044 = vmatpush1.bf16.msra.mxu0 %v1006
    %1045 = vmatprep.subr.bf16.mxu0 0
    %1046 = vmatpush1.bf16.msra.mxu0 %v1007
    %1047 = vmatprep.subr.bf16.mxu0 0
    %1048 = vmatpush1.bf16.msra.mxu0 %v1008
    %1049 = vmatprep.subr.bf16.mxu0 0
    %1050 = vmatpush1.bf16.msra.mxu0 %v1009
    %1051 = vmatprep.subr.bf16.mxu0 0
    %1052 = vmatpush1.bf16.msra.mxu0 %v1010
    %1053 = vmatprep.subr.bf16.mxu0 0
    %1054 = vmatpush1.bf16.msra.mxu0 %v1011
    %1055 = vmatprep.subr.bf16.mxu0 0
    %1056 = vmatpush1.bf16.msra.mxu0 %v1012
    %1057 = vmatprep.subr.bf16.mxu0 0
    %1058 = vmatpush1.bf16.msra.mxu0 %v1013
    %1059 = vmatprep.subr.bf16.mxu0 0
    %1060 = vmatpush1.bf16.msra.mxu0 %v1014
    %1061 = vmatprep.subr.bf16.mxu0 0
    %1062 = vmatpush1.bf16.msra.mxu0 %v1015
    %1063 = vmatprep.subr.bf16.mxu0 0
    %1064 = vmatpush1.bf16.msra.mxu0 %v1016
    %1065 = vmatprep.mubr.bf16.mxu0 %v897
    %1066 = vmatmul.mubr.bf16.gmra.mrb[0].mxu0 %v896
    %v1067 = vpop.f32.mrb[0].mxu0
    %v1068 = vadd.f32 %v935, %v1067
    %v1069 = vpop.f32.mrb[0].mxu0
    %v1070 = vpop.f32.mrb[0].mxu0
    %v1071 = vadd.f32 %v935, %v1070
    %v1072 = vpop.f32.mrb[0].mxu0
    %1073 = vdwg.mxu0
    %v1074 = vmax.f32 %v1068, 0.0
    %v1075 = vmax.f32 %v1071, 0.0
    %v1076 = vpack.c.bf16 %v1075, %v1074
    %v1077 = vld [vmem:[#allocation8] sm:$0xf]
    %v1078 = vld [vmem:[#allocation8 + $0x4] sm:$0xf]
    %v1079 = vld [vmem:[#allocation8 + $0x8] sm:$0xf]
    %v1080 = vld [vmem:[#allocation8 + $0xc] sm:$0xf]
    %v1081 = vld [vmem:[#allocation8 + $0x10] sm:$0xf]
    %v1082 = vld [vmem:[#allocation8 + $0x14] sm:$0xf]
    %v1083 = vld [vmem:[#allocation8 + $0x18] sm:$0xf]
    %v1084 = vld [vmem:[#allocation8 + $0x1c] sm:$0xf]
    %v1085 = vld [vmem:[#allocation8 + $0x20] sm:$0xf]
    %v1086 = vld [vmem:[#allocation8 + $0x24] sm:$0xf]
    %v1087 = vld [vmem:[#allocation8 + $0x28] sm:$0xf]
    %v1088 = vld [vmem:[#allocation8 + $0x2c] sm:$0xf]
    %v1089 = vld [vmem:[#allocation8 + $0x30] sm:$0xf]
    %v1090 = vld [vmem:[#allocation8 + $0x34] sm:$0xf]
    %v1091 = vld [vmem:[#allocation8 + $0x38] sm:$0xf]
    %v1092 = vld [vmem:[#allocation8 + $0x3c] sm:$0xf]
    %v1093 = vld [vmem:[%s10] sm:$0x1]
    %v1095 = vlaneseq
    %v1096 = vshrl.u32 %v1095, 7
    %v1097 = vsub.s32 0, %v1096
    %v1098 = vrot.slane %v1093, %v1097
    %v1116 = vunpack.c.l.b16 %v1077
    %v1117 = vunpack.c.l.b16 %v1078
    %v1118 = vunpack.c.l.b16 %v1079
    %v1119 = vunpack.c.l.b16 %v1080
    %v1120 = vunpack.c.l.b16 %v1081
    %v1121 = vunpack.c.l.b16 %v1082
    %v1122 = vunpack.c.l.b16 %v1083
    %v1123 = vunpack.c.l.b16 %v1084
    %v1124 = vunpack.c.l.b16 %v1085
    %v1125 = vunpack.c.l.b16 %v1086
    %v1126 = vunpack.c.l.b16 %v1087
    %v1127 = vunpack.c.l.b16 %v1088
    %v1128 = vunpack.c.l.b16 %v1089
    %v1129 = vunpack.c.l.b16 %v1090
    %v1130 = vunpack.c.l.b16 %v1091
    %v1131 = vunpack.c.l.b16 %v1092
    %v1132 = vpack.c.b16 %v1117, %v1116
    %v1133 = vpack.c.b16 %v1119, %v1118
    %v1134 = vpack.c.b16 %v1121, %v1120
    %v1135 = vpack.c.b16 %v1123, %v1122
    %v1136 = vpack.c.b16 %v1125, %v1124
    %v1137 = vpack.c.b16 %v1127, %v1126
    %v1138 = vpack.c.b16 %v1129, %v1128
    %v1139 = vpack.c.b16 %v1131, %v1130
    %1148 = vmatprep.subr.bf16.mxu0 0
    %1149 = vmatpush1.bf16.msra.mxu0 %v1132
    %1150 = vmatprep.subr.bf16.mxu0 0
    %1151 = vmatpush1.bf16.msra.mxu0 %v1133
    %1152 = vmatprep.subr.bf16.mxu0 0
    %1153 = vmatpush1.bf16.msra.mxu0 %v1134
    %1154 = vmatprep.subr.bf16.mxu0 0
    %1155 = vmatpush1.bf16.msra.mxu0 %v1135
    %1156 = vmatprep.subr.bf16.mxu0 0
    %1157 = vmatpush1.bf16.msra.mxu0 %v1136
    %1158 = vmatprep.subr.bf16.mxu0 0
    %1159 = vmatpush1.bf16.msra.mxu0 %v1137
    %1160 = vmatprep.subr.bf16.mxu0 0
    %1161 = vmatpush1.bf16.msra.mxu0 %v1138
    %1162 = vmatprep.subr.bf16.mxu0 0
    %1163 = vmatpush1.bf16.msra.mxu0 %v1139
    %1164 = vmatprep.subr.bf16.mxu0 0
    %1165 = vmatpush1.bf16.msra.mxu0 0
    %1166 = vmatprep.subr.bf16.mxu0 0
    %1167 = vmatpush1.bf16.msra.mxu0 0
    %1168 = vmatprep.subr.bf16.mxu0 0
    %1169 = vmatpush1.bf16.msra.mxu0 0
    %1170 = vmatprep.subr.bf16.mxu0 0
    %1171 = vmatpush1.bf16.msra.mxu0 0
    %1172 = vmatprep.subr.bf16.mxu0 0
    %1173 = vmatpush1.bf16.msra.mxu0 0
    %1174 = vmatprep.subr.bf16.mxu0 0
    %1175 = vmatpush1.bf16.msra.mxu0 0
    %1176 = vmatprep.subr.bf16.mxu0 0
    %1177 = vmatpush1.bf16.msra.mxu0 0
    %1178 = vmatprep.subr.bf16.mxu0 0
    %1179 = vmatpush1.bf16.msra.mxu0 0
    %1180 = vmatprep.mubr.bf16.mxu0 0
    %1181 = vmatmul.mubr.bf16.gmra.mrb[0].mxu0 %v1076
    %v1182 = vpop.f32.mrb[0].mxu0
    %v1183 = vadd.f32 %v1098, %v1182
    %v1184 = vpop.f32.mrb[0].mxu0
    %v1185 = vpop.f32.mrb[0].mxu0
    %v1186 = vadd.f32 %v1098, %v1185
    %v1187 = vpop.f32.mrb[0].mxu0
    %1188 = vdwg.mxu0
    %1189 = vst [vmem:[#allocation10] sm:$0xff] %v1183
    %1190 = vst [vmem:[#allocation10 + $0x8] sm:$0xff] %v1186
    // Predicated region
    $region62: #{tpu_custom_call.1} parent=1 // pred_check
      _
    $region63: #{tpu_custom_call.1} parent=1 // pred_check_branch
      %1192 = sbr.rel (0) target = $region65
    $region64: #{tpu_custom_call.1} parent=1 // pred_region
      %s1194 = ssub.s32 256, 256
      %1195 = vsyncadd [#allocation4], %s1194
      %s1196 = sshll.u32 [#allocation10], 4
      %s1197 = int_to_ptr.vmem [resolvable:$true] %s1196
      %1202 = dma.vmem_to_hbm [thread:$0]  %s1197, 256, %s11, [#allocation4], 128, 128, 8
    $region65: #{tpu_custom_call.1} parent=1 // pred_fallthru
      _
    // Predicated region
    $region66: #{tpu_custom_call.1} parent=1 // pred_check
      _
    $region67: #{tpu_custom_call.1} parent=1 // pred_check_branch
      %1204 = sbr.rel (0) target = $region69
    $region68: #{tpu_custom_call.1} parent=1 // pred_region
      %1205 = dma.done [#allocation4], 256
    $region69: #{tpu_custom_call.1} parent=1 // pred_fallthru
      _
    %1206 = vsyncpa [#allocation3], 1
    %1207 = vsyncpa [#allocation6], 1
    %1208 = vsyncpa [#allocation9], 1
    %1209 = vsyncpa [#allocation4], 1

</llo_original>
